<compile_context>
chip_gen: v7x
topology: tpu7x:2x2x1
jax: 0.10.0
libtpu: 0.0.40
codegen_flags: <defaults>
</compile_context>

<pallas_src>
from functools import partial

import jax
import jax.numpy as jnp
from jax.experimental import pallas as pl
from jax.experimental.pallas import tpu as pltpu


def conv1d_sub_kernel(x_ref, wt_ref, add_ref, o_ref):
    # x_ref  : (B, C_in*L)           f32  -- raw NCL activations, flat (free reshape)
    # wt_ref : (C_in*L, C_out*L_out) bf16 -- banded dense conv weights (transposed)
    # add_ref: (1, C_out*L_out)      f32  -- bias - const, pre-fused & pre-flattened
    # o_ref  : (B, C_out*L_out)      f32  -- NCL output, flat (free reshape outside)
    xb = x_ref[...].astype(jnp.bfloat16)          # cast folded into the kernel (VPU)
    acc = jnp.dot(xb, wt_ref[...], preferred_element_type=jnp.float32)   # MXU
    o_ref[...] = acc + add_ref[...]               # single broadcast add epilogue


def prepare_conv_params(weight, bias, const, *, groups, kernel_size, stride, length):
    """One-time static preprocessing (hoisted out of the per-call path).

    weight: (C_out, C_in//groups, K), bias: (C_out,), const: (L_out,)
    Returns:
      wt     : (C_in*L, C_out*L_out) bf16  banded dense weight matrix such that
               conv(x)[n].reshape(-1) == x[n].reshape(-1) @ wt  (stride == K, pad 0)
      addend : (1, C_out*L_out)      f32   (bias[:, None] - const[None, :]).flatten()
    """
    C_out, C_in_g, K = weight.shape
    assert K == kernel_size and stride == K, "formulation assumes non-overlapping conv"
    C_in = C_in_g * groups
    L_out = const.shape[0]
    assert length == L_out * K, "input length must equal L_out * K"

    # Group-masked dense weight (C_out, C_in, K).
    out_per_g = C_out // groups
    g_of_co = jnp.arange(C_out) // out_per_g
    ci = jnp.arange(C_in)
    g_of_ci = ci // C_in_g
    local_ci = ci % C_in_g
    dense_w = weight[:, local_ci, :] * (g_of_ci[None, :] == g_of_co[:, None])[:, :, None]

    # Banded placement along the output-length diagonal:
    #   wt[ci*L + lo*K + k, co*L_out + lo] = dense_w[co, ci, k]
    w_ikc = jnp.transpose(dense_w, (1, 2, 0))                       # (C_in, K, C_out)
    eye_lo = jnp.eye(L_out, dtype=weight.dtype)                     # (L_out, L_out)
    wt5 = eye_lo[None, :, None, None, :] * w_ikc[:, None, :, :, None]
    wt = wt5.reshape(C_in * length, C_out * L_out).astype(jnp.bfloat16)

    addend = (bias[:, None] - const[None, :]).reshape(1, C_out * L_out).astype(jnp.float32)
    return wt, addend


def _pick_block_batch(n):
    # Largest sublane-aligned batch block that still yields >=2 grid steps (v7x: two
    # TensorCores share the grid); capped so the double-buffered per-step footprint
    # stays far below VMEM on every generation. Falls back to one full-batch block.
    for b in (256, 128, 64, 32, 16, 8):
        if n % b == 0 and n // b >= 2:
            return b
    return n


@partial(jax.jit, static_argnames=("c_out", "l_out"))
def conv1d_sub_forward(x, wt, addend, *, c_out, l_out):
    """x: (N, C_in, L) f32; wt: (C_in*L, C_out*L_out) bf16; addend: (1, C_out*L_out) f32."""
    N, C_in, L = x.shape
    CL = C_in * L
    M = c_out * l_out
    assert wt.shape == (CL, M) and addend.shape == (1, M)

    x2 = x.reshape(N, CL)                 # free: collapses contiguous minor dims
    B = _pick_block_batch(N)

    out2 = pl.pallas_call(
        conv1d_sub_kernel,
        out_shape=jax.ShapeDtypeStruct((N, M), jnp.float32),
        grid=(N // B,),
        in_specs=[
            pl.BlockSpec((B, CL), lambda i: (i, 0)),   # batch-tiled activations
            pl.BlockSpec((CL, M), lambda i: (0, 0)),   # shared banded weights
            pl.BlockSpec((1, M), lambda i: (0, 0)),    # shared fused bias-const addend
        ],
        out_specs=pl.BlockSpec((B, M), lambda i: (i, 0)),
        compiler_params=pltpu.CompilerParams(
            dimension_semantics=("parallel",)),        # v7x: batch blocks split over TCs
    )(x2, wt, addend)

    return out2.reshape(N, c_out, l_out)  # free: splits the minor dim (NCL layout)


if __name__ == "__main__":
    key = jax.random.PRNGKey(0)
    k1, k2, k3 = jax.random.split(key, 3)

    # TODO(synk): the original Conv1d(5, 10, 4, stride=4, groups=3) is invalid in PyTorch
    # (in_channels=5 not divisible by groups=3); groups=5 keeps a valid grouped conv.
    # TODO(synk): the original input (1, 5, 80) gives L_out=20 which cannot broadcast with
    # the length-19 constant in the PyTorch source; L=76 is used so L_out=19 matches it.
    C_in, L = 5, 76
    C_out, K, stride, groups = 10, 4, 4, 5
    L_out = (L - K) // stride + 1          # 19
    N = 16                                 # small batch; exercises the 2-step parallel grid

    x = jax.random.normal(k1, (N, C_in, L), dtype=jnp.float32)
    fan_in = (C_in // groups) * K
    bound = 1.0 / (fan_in ** 0.5)
    weight = jax.random.uniform(k2, (C_out, C_in // groups, K), jnp.float32, -bound, bound)
    bias = jax.random.uniform(k3, (C_out,), jnp.float32, -bound, bound)
    const = jnp.array([11, 21, 27, 32, 99, 8, 42, 27, 90, 65, 96, 72, 100, 85, 76, 52, 19, 93, 39],
                      dtype=jnp.float32)

    # Static preprocessing: done exactly once, outside the jitted per-call path.
    wt, addend = prepare_conv_params(weight, bias, const, groups=groups,
                                     kernel_size=K, stride=stride, length=L)

    out = conv1d_sub_forward(x, wt, addend, c_out=C_out, l_out=L_out)
    out = jax.block_until_ready(out)

    # Reference: same bf16-quantized operands (kernel feeds bf16 to the MXU, f32 accumulate),
    # plain XLA grouped conv in f32, then the same f32 bias/const epilogue.
    ref = jax.lax.conv_general_dilated(
        x.astype(jnp.bfloat16).astype(jnp.float32),
        weight.astype(jnp.bfloat16).astype(jnp.float32),
        window_strides=(stride,), padding="VALID",
        feature_group_count=groups, dimension_numbers=("NCH", "OIH", "NCH"))
    ref = ref + bias[None, :, None] - const[None, None, :]

    assert out.shape == (N, C_out, L_out)
    assert jnp.allclose(out, ref, atol=1e-3, rtol=1e-4)

    # Also exercise the spec's original batch size (single full-batch block path).
    out1 = jax.block_until_ready(
        conv1d_sub_forward(x[:1], wt, addend, c_out=C_out, l_out=L_out))
    assert out1.shape == (1, C_out, L_out)
    assert jnp.allclose(out1, ref[:1], atol=1e-3, rtol=1e-4)

    print("KERNEL_OK")
</pallas_src>

<mosaic_0001>
module attributes {stable_mosaic.version = 11 : i64} {
  func.func @conv1d_sub_kernel(%arg0: i32, %arg1: memref<8x380xf32, #tpu.memory_space<vmem>>, %arg2: memref<380x190xbf16, #tpu.memory_space<vmem>>, %arg3: memref<1x190xf32, #tpu.memory_space<vmem>>, %arg4: memref<8x190xf32, #tpu.memory_space<vmem>>) attributes {dimension_semantics = [#tpu.dimension_semantics<parallel>], iteration_bounds = array<i64: 2>, scalar_prefetch = 0 : i64, scratch_operands = 0 : i64, tpu.core_type = #tpu.core_type<tc>, window_params = [{transform_indices = @transform_0, window_bounds = array<i64: 8, 380>}, {pipeline_mode = #tpu.pipeline_mode<synchronous>, transform_indices = @transform_1, window_bounds = array<i64: 380, 190>}, {pipeline_mode = #tpu.pipeline_mode<synchronous>, transform_indices = @transform_2, window_bounds = array<i64: 1, 190>}, {transform_indices = @transform_3, window_bounds = array<i64: 8, 190>}]} {
    %c0 = arith.constant 0 : index
    %c0_0 = arith.constant 0 : index
    %0 = vector.load %arg1[%c0, %c0_0] : memref<8x380xf32, #tpu.memory_space<vmem>>, vector<8x380xf32>
    %1 = arith.truncf %0 : vector<8x380xf32> to vector<8x380xbf16>
    %c0_1 = arith.constant 0 : index
    %c0_2 = arith.constant 0 : index
    %2 = vector.load %arg2[%c0_1, %c0_2] : memref<380x190xbf16, #tpu.memory_space<vmem>>, vector<380x190xbf16>
    %cst = arith.constant dense<0.000000e+00> : vector<8x190xf32>
    %3 = tpu.matmul %1, %2, %cst {dimension_numbers = #tpu.dot_dimension_numbers<[1], [0], [0], [1], [0, 0, 1, 1], [], []>} : vector<8x380xbf16>, vector<380x190xbf16>, vector<8x190xf32> -> vector<8x190xf32>
    %c0_3 = arith.constant 0 : index
    %c0_4 = arith.constant 0 : index
    %4 = vector.load %arg3[%c0_3, %c0_4] : memref<1x190xf32, #tpu.memory_space<vmem>>, vector<1x190xf32>
    %5 = vector.broadcast %4 : vector<1x190xf32> to vector<8x190xf32>
    %6 = arith.addf %3, %5 : vector<8x190xf32>
    %c0_5 = arith.constant 0 : index
    %c0_6 = arith.constant 0 : index
    %7 = vector.load %arg4[%c0_5, %c0_6] : memref<8x190xf32, #tpu.memory_space<vmem>>, vector<8x190xf32>
    tpu.vector_store %arg4[%c0_5, %c0_6], %6 {strides = array<i32>} : memref<8x190xf32, #tpu.memory_space<vmem>>, vector<8x190xf32>,
    return
  }
  func.func @transform_0(%arg0: i32) -> (i32, i32) {
    %c0_i32 = arith.constant 0 : i32
    %c0_i32_0 = arith.constant 0 : i32
    return %arg0, %c0_i32 : i32, i32
  }
  func.func @transform_1(%arg0: i32) -> (i32, i32) {
    %c0_i32 = arith.constant 0 : i32
    %c0_i32_0 = arith.constant 0 : i32
    %c0_i32_1 = arith.constant 0 : i32
    return %c0_i32, %c0_i32_0 : i32, i32
  }
  func.func @transform_2(%arg0: i32) -> (i32, i32) {
    %c0_i32 = arith.constant 0 : i32
    %c0_i32_0 = arith.constant 0 : i32
    %c0_i32_1 = arith.constant 0 : i32
    return %c0_i32, %c0_i32_0 : i32, i32
  }
  func.func @transform_3(%arg0: i32) -> (i32, i32) {
    %c0_i32 = arith.constant 0 : i32
    %c0_i32_0 = arith.constant 0 : i32
    return %arg0, %c0_i32 : i32, i32
  }
}

</mosaic_0001>

<llo_original>
// kernel: conv1d_sub_forward.1
$region0: #{conv1d_sub_forward.1}
  #allocation0 [shape = 'u32[]', space=smem, size = 0x4, offset = 0x4, fixed_abs, tag = 'smem constant byte address 0x4 - core index']
  #allocation1 [shape = 'u32[144,128]{1,0:T(1,128)}', space=vmem, size = 0x12000, scoped, tag = 'internal scratch']
  %s0 = inlined_call_operand.vmem [shape: f32[16,380], index: 0, kind: input, shape index: {}]
  %s1 = inlined_call_operand.vmem [shape: bf16[380,190], index: 1, kind: input, shape index: {}]
  %s2 = inlined_call_operand.vmem [shape: f32[1,190], index: 2, kind: input, shape index: {}]
  %s3 = inlined_call_operand.vmem [shape: f32[16,190], index: 3, kind: output, shape index: {}]
  %s4 = sld [smem:[#allocation0]]
  $region45: #{conv1d_sub_forward.1} parent=0
    _
  %s6 = ssub.s32 1, %s4
  %s7 = scalar_select 0, %s6, %s4
  loop: start=0, step=1, limit=4
  $region2: #{conv1d_sub_forward.1} parent=0 // loop_pre_header
    _
  $region3: #{conv1d_sub_forward.1} parent=0 // loop_header
    %s9 = sphi 0, %s13
    %p10 = scmp.ge.s32.totalorder %s9, 4
    %s19 = sphi 0, %s21
    %s22 = sphi 0, %s19
    %s23 = sphi 0, %s22
    %s39 = sphi 0, %s23
    %s43 = sphi 0, %s43
    %s45 = sphi 0, %s43
    %s46 = sphi 0, %s45
    %s60 = sphi 0, %s46
    %s64 = sphi 0, %s64
    %s66 = sphi 0, %s64
    %s67 = sphi 0, %s66
    %s81 = sphi 0, %s67
    %s87 = sphi 0, %s89
    %s90 = sphi 0, %s87
    %s91 = sphi 0, %s90
    %s107 = sphi 0, %s91
  $region4: #{conv1d_sub_forward.1} parent=0 // loop_header_branch
    %12 = sbr.rel (%p10) target = $region8
  $region5: #{conv1d_sub_forward.1} parent=0 // loop_body
    %s14 = ssub.s32 %s9, 1
    %s15 = ssub.s32 %s9, 2
    %s16 = sadd.s32 %s9, 1
    %s17 = ssub.s32 %s9, %s16
    %p18 = scmp.eq.s32.totalorder %s17, 0
    %s20 = sadd.s32 %s19, 1
    %s21 = scalar_select %p18, %s19, %s20
    %p24 = pneg %p18
    %p25 = scmp.eq.s32.totalorder %s9, 1
    %p26 = por %p24, %p25
    %p27 = scmp.ne.s32.totalorder %s19, %s22
    %p28 = scmp.eq.s32.totalorder %s9, 0
    %p29 = por %p27, %p28
    %p30 = scmp.ne.s32.totalorder %s19, %s22
    %p31 = scmp.eq.s32.totalorder %s14, 1
    %p32 = por %p30, %p31
    %p33 = scmp.ne.s32.totalorder %s22, %s23
    %p34 = scmp.eq.s32.totalorder %s14, 0
    %p35 = por %p33, %p34
    %p36 = scmp.ne.s32.totalorder %s22, %s23
    %p37 = scmp.eq.s32.totalorder %s15, 1
    %p38 = por %p36, %p37
    %p40 = scmp.ne.s32.totalorder %s23, %s39
    %p41 = scmp.eq.s32.totalorder %s15, 0
    %p42 = por %p40, %p41
    %s44 = sadd.s32 %s43, 1
    %p47 = scmp.eq.s32.totalorder %s9, 1
    %p48 = scmp.ne.s32.totalorder %s43, %s45
    %p49 = scmp.eq.s32.totalorder %s9, 0
    %p50 = por %p48, %p49
    %p51 = scmp.ne.s32.totalorder %s43, %s45
    %p52 = scmp.eq.s32.totalorder %s14, 1
    %p53 = por %p51, %p52
    %p54 = scmp.ne.s32.totalorder %s45, %s46
    %p55 = scmp.eq.s32.totalorder %s14, 0
    %p56 = por %p54, %p55
    %p57 = scmp.ne.s32.totalorder %s45, %s46
    %p58 = scmp.eq.s32.totalorder %s15, 1
    %p59 = por %p57, %p58
    %p61 = scmp.ne.s32.totalorder %s46, %s60
    %p62 = scmp.eq.s32.totalorder %s15, 0
    %p63 = por %p61, %p62
    %s65 = sadd.s32 %s64, 1
    %p68 = scmp.eq.s32.totalorder %s9, 1
    %p69 = scmp.ne.s32.totalorder %s64, %s66
    %p70 = scmp.eq.s32.totalorder %s9, 0
    %p71 = por %p69, %p70
    %p72 = scmp.ne.s32.totalorder %s64, %s66
    %p73 = scmp.eq.s32.totalorder %s14, 1
    %p74 = por %p72, %p73
    %p75 = scmp.ne.s32.totalorder %s66, %s67
    %p76 = scmp.eq.s32.totalorder %s14, 0
    %p77 = por %p75, %p76
    %p78 = scmp.ne.s32.totalorder %s66, %s67
    %p79 = scmp.eq.s32.totalorder %s15, 1
    %p80 = por %p78, %p79
    %p82 = scmp.ne.s32.totalorder %s67, %s81
    %p83 = scmp.eq.s32.totalorder %s15, 0
    %p84 = por %p82, %p83
    %s85 = ssub.s32 %s9, %s16
    %p86 = scmp.eq.s32.totalorder %s85, 0
    %s88 = sadd.s32 %s87, 1
    %s89 = scalar_select %p86, %s87, %s88
    %p92 = pneg %p86
    %p93 = scmp.eq.s32.totalorder %s9, 1
    %p94 = por %p92, %p93
    %p95 = scmp.ne.s32.totalorder %s87, %s90
    %p96 = scmp.eq.s32.totalorder %s9, 0
    %p97 = por %p95, %p96
    %p98 = scmp.ne.s32.totalorder %s87, %s90
    %p99 = scmp.eq.s32.totalorder %s14, 1
    %p100 = por %p98, %p99
    %p101 = scmp.ne.s32.totalorder %s90, %s91
    %p102 = scmp.eq.s32.totalorder %s14, 0
    %p103 = por %p101, %p102
    %p104 = scmp.ne.s32.totalorder %s90, %s91
    %p105 = scmp.eq.s32.totalorder %s15, 1
    %p106 = por %p104, %p105
    %p108 = scmp.ne.s32.totalorder %s91, %s107
    %p109 = scmp.eq.s32.totalorder %s15, 0
    %p110 = por %p108, %p109
    %p111 = scmp.le.s32.totalorder 1, %s9
    %p112 = scmp.lt.s32.totalorder %s9, 3
    %p113 = pnand %p111, %p112
    %p114 = pneg %p113
    // Predicated region
    $region9: #{conv1d_sub_forward.1} parent=5 // pred_check
      _
    $region10: #{conv1d_sub_forward.1} parent=5 // pred_check_branch
      %116 = sbr.rel (%p113) target = $region12
    $region11: #{conv1d_sub_forward.1} parent=5 // pred_region
      %s117 = ssub.s32 %s9, 1
      // Predicated region
      $region13: #{conv1d_sub_forward.1} parent=11 // pred_check
        %p118 = pneg %p56
      $region14: #{conv1d_sub_forward.1} parent=11 // pred_check_branch
        %120 = sbr.rel (%p118) target = $region16
      $region15: #{conv1d_sub_forward.1} parent=11 // pred_region
        _
      $region16: #{conv1d_sub_forward.1} parent=11 // pred_fallthru
        _
      // Predicated region
      $region17: #{conv1d_sub_forward.1} parent=11 // pred_check
        %p121 = pneg %p77
      $region18: #{conv1d_sub_forward.1} parent=11 // pred_check_branch
        %123 = sbr.rel (%p121) target = $region20
      $region19: #{conv1d_sub_forward.1} parent=11 // pred_region
        _
      $region20: #{conv1d_sub_forward.1} parent=11 // pred_fallthru
        _
    $region12: #{conv1d_sub_forward.1} parent=5 // pred_fallthru
      _
    %p124 = scmp.lt.s32.totalorder %s9, 2
    // Predicated region
    $region21: #{conv1d_sub_forward.1} parent=5 // pred_check
      %p125 = pneg %p124
    $region22: #{conv1d_sub_forward.1} parent=5 // pred_check_branch
      %127 = sbr.rel (%p125) target = $region24
    $region23: #{conv1d_sub_forward.1} parent=5 // pred_region
      // Predicated region
      $region25: #{conv1d_sub_forward.1} parent=23 // pred_check
        %p128 = pneg %p29
      $region26: #{conv1d_sub_forward.1} parent=23 // pred_check_branch
        %130 = sbr.rel (%p128) target = $region28
      $region27: #{conv1d_sub_forward.1} parent=23 // pred_region
        %p131 = scmp.lt.s32.totalorder %s9, 1
        %s132 = scalar_select %p131, %s9, 1
        %s133 = smul.addr %s132, 3
        %s134 = smul.addr %s133, 8
        %s135 = scalar_lea.vmem %s0, %s134
      $region28: #{conv1d_sub_forward.1} parent=23 // pred_fallthru
        _
    $region24: #{conv1d_sub_forward.1} parent=5 // pred_fallthru
      _
    %p136 = scmp.le.s32.totalorder 1, %s9
    %p137 = scmp.lt.s32.totalorder %s9, 3
    %p138 = pnand %p136, %p137
    %p139 = pneg %p138
    // Predicated region
    $region29: #{conv1d_sub_forward.1} parent=5 // pred_check
      _
    $region30: #{conv1d_sub_forward.1} parent=5 // pred_check_branch
      %141 = sbr.rel (%p138) target = $region32
    $region31: #{conv1d_sub_forward.1} parent=5 // pred_region
      %s142 = ssub.s32 %s9, 1
      %p143 = scmp.lt.s32.totalorder %s14, 1
      %s144 = scalar_select %p143, %s14, 1
      %s145 = smul.addr %s144, 3
      %s146 = smul.addr %s145, 8
      %s147 = scalar_lea.vmem %s0, %s146
      %p148 = pneg %p35
      %p149 = pneg %p32
      %p150 = pneg %p56
      %p151 = pneg %p53
      %p152 = pneg %p77
      %p153 = pneg %p74
      %p154 = pneg %p103
      %p155 = pneg %p100
      %p156 = scmp.lt.s32.totalorder %s14, 1
      %s157 = scalar_select %p156, %s14, 1
      %s158 = smul.addr %s157, 2
      %s159 = smul.addr %s158, 8
      %s160 = scalar_lea.vmem %s3, %s159
      %p161 = scmp.lt.s32.totalorder %s14, 1
      %s162 = scalar_select %p161, %s14, 1
      %s163 = smul.addr %s162, 3
      %s164 = smul.addr %s163, 8
      %s165 = scalar_lea.vmem %s0, %s164
      %p166 = scmp.lt.s32.totalorder %s14, 1
      %s167 = scalar_select %p166, %s14, 1
      %s168 = smul.addr %s167, 2
      %s169 = smul.addr %s168, 8
      %s170 = scalar_lea.vmem %s3, %s169
      %v172 = vld [vmem:[%s165] sm:$0xff]
      %v173 = vld [vmem:[%s165 + $0x8] sm:$0xff]
      %v174 = vld [vmem:[%s165 + $0x10] sm:$0xff]
      %v175 = vpack.c.bf16 %v172, %v172
      %v176 = vpack.c.bf16 %v173, %v173
      %v177 = vpack.c.bf16 %v174, %v174
      %v178 = vld [vmem:[%s1] sm:$0xff]
      %v179 = vld [vmem:[%s1 + $0x8] sm:$0xff]
      %v180 = vld [vmem:[%s1 + $0x10] sm:$0xff]
      %v181 = vld [vmem:[%s1 + $0x18] sm:$0xff]
      %v182 = vld [vmem:[%s1 + $0x20] sm:$0xff]
      %v183 = vld [vmem:[%s1 + $0x28] sm:$0xff]
      %v184 = vld [vmem:[%s1 + $0x30] sm:$0xff]
      %v185 = vld [vmem:[%s1 + $0x38] sm:$0xff]
      %v186 = vld [vmem:[%s1 + $0x40] sm:$0xff]
      %v187 = vld [vmem:[%s1 + $0x48] sm:$0xff]
      %v188 = vld [vmem:[%s1 + $0x50] sm:$0xff]
      %v189 = vld [vmem:[%s1 + $0x58] sm:$0xff]
      %v190 = vld [vmem:[%s1 + $0x60] sm:$0xff]
      %v191 = vld [vmem:[%s1 + $0x68] sm:$0xff]
      %v192 = vld [vmem:[%s1 + $0x70] sm:$0xff]
      %v193 = vld [vmem:[%s1 + $0x78] sm:$0xff]
      %v194 = vld [vmem:[%s1 + $0x80] sm:$0xff]
      %v195 = vld [vmem:[%s1 + $0x88] sm:$0xff]
      %v196 = vld [vmem:[%s1 + $0x90] sm:$0xff]
      %v197 = vld [vmem:[%s1 + $0x98] sm:$0xff]
      %v198 = vld [vmem:[%s1 + $0xa0] sm:$0xff]
      %v199 = vld [vmem:[%s1 + $0xa8] sm:$0xff]
      %v200 = vld [vmem:[%s1 + $0xb0] sm:$0xff]
      %v201 = vld [vmem:[%s1 + $0xb8] sm:$0xff]
      %v202 = vld [vmem:[%s1 + $0xc0] sm:$0xff]
      %v203 = vld [vmem:[%s1 + $0xc8] sm:$0xff]
      %v204 = vld [vmem:[%s1 + $0xd0] sm:$0xff]
      %v205 = vld [vmem:[%s1 + $0xd8] sm:$0xff]
      %v206 = vld [vmem:[%s1 + $0xe0] sm:$0xff]
      %v207 = vld [vmem:[%s1 + $0xe8] sm:$0xff]
      %v208 = vld [vmem:[%s1 + $0xf0] sm:$0xff]
      %v209 = vld [vmem:[%s1 + $0xf8] sm:$0xff]
      %v210 = vld [vmem:[%s1 + $0x100] sm:$0xff]
      %v211 = vld [vmem:[%s1 + $0x108] sm:$0xff]
      %v212 = vld [vmem:[%s1 + $0x110] sm:$0xff]
      %v213 = vld [vmem:[%s1 + $0x118] sm:$0xff]
      %v214 = vld [vmem:[%s1 + $0x120] sm:$0xff]
      %v215 = vld [vmem:[%s1 + $0x128] sm:$0xff]
      %v216 = vld [vmem:[%s1 + $0x130] sm:$0xff]
      %v217 = vld [vmem:[%s1 + $0x138] sm:$0xff]
      %v218 = vld [vmem:[%s1 + $0x140] sm:$0xff]
      %v219 = vld [vmem:[%s1 + $0x148] sm:$0xff]
      %v220 = vld [vmem:[%s1 + $0x150] sm:$0xff]
      %v221 = vld [vmem:[%s1 + $0x158] sm:$0xff]
      %v222 = vld [vmem:[%s1 + $0x160] sm:$0xff]
      %v223 = vld [vmem:[%s1 + $0x168] sm:$0xff]
      %v224 = vld [vmem:[%s1 + $0x170] sm:$0xff]
      %v225 = vld [vmem:[%s1 + $0x178] sm:$0x33]
      %v226 = vld [vmem:[%s2] sm:$0x3]
      %v228 = vlaneseq
      %v229 = vshrl.u32 %v228, 7
      %v230 = vsub.s32 0, %v229
      %v231 = vrot.slane %v226, %v230
      %v232 = vlaneseq
      %v233 = vshrl.u32 %v232, 7
      %v234 = vsub.s32 1, %v233
      %v235 = vrot.slane %v226, %v234
      %v286 = vunpack.c.l.b16 %v178
      %v287 = vunpack.c.h.b16 %v178
      %v288 = vunpack.c.l.b16 %v179
      %v289 = vunpack.c.h.b16 %v179
      %v290 = vunpack.c.l.b16 %v180
      %v291 = vunpack.c.h.b16 %v180
      %v292 = vunpack.c.l.b16 %v181
      %v293 = vunpack.c.h.b16 %v181
      %v294 = vunpack.c.l.b16 %v182
      %v295 = vunpack.c.h.b16 %v182
      %v296 = vunpack.c.l.b16 %v183
      %v297 = vunpack.c.h.b16 %v183
      %v298 = vunpack.c.l.b16 %v184
      %v299 = vunpack.c.h.b16 %v184
      %v300 = vunpack.c.l.b16 %v185
      %v301 = vunpack.c.h.b16 %v185
      %v302 = vunpack.c.l.b16 %v186
      %v303 = vunpack.c.h.b16 %v186
      %v304 = vunpack.c.l.b16 %v187
      %v305 = vunpack.c.h.b16 %v187
      %v306 = vunpack.c.l.b16 %v188
      %v307 = vunpack.c.h.b16 %v188
      %v308 = vunpack.c.l.b16 %v189
      %v309 = vunpack.c.h.b16 %v189
      %v310 = vunpack.c.l.b16 %v190
      %v311 = vunpack.c.h.b16 %v190
      %v312 = vunpack.c.l.b16 %v191
      %v313 = vunpack.c.h.b16 %v191
      %v314 = vunpack.c.l.b16 %v192
      %v315 = vunpack.c.h.b16 %v192
      %v316 = vunpack.c.l.b16 %v193
      %v317 = vunpack.c.h.b16 %v193
      %v318 = vunpack.c.l.b16 %v194
      %v319 = vunpack.c.h.b16 %v194
      %v320 = vunpack.c.l.b16 %v195
      %v321 = vunpack.c.h.b16 %v195
      %v322 = vunpack.c.l.b16 %v196
      %v323 = vunpack.c.h.b16 %v196
      %v324 = vunpack.c.l.b16 %v197
      %v325 = vunpack.c.h.b16 %v197
      %v326 = vunpack.c.l.b16 %v198
      %v327 = vunpack.c.h.b16 %v198
      %v328 = vunpack.c.l.b16 %v199
      %v329 = vunpack.c.h.b16 %v199
      %v330 = vunpack.c.l.b16 %v200
      %v331 = vunpack.c.h.b16 %v200
      %v332 = vunpack.c.l.b16 %v201
      %v333 = vunpack.c.h.b16 %v201
      %v334 = vunpack.c.l.b16 %v202
      %v335 = vunpack.c.h.b16 %v202
      %v336 = vunpack.c.l.b16 %v203
      %v337 = vunpack.c.h.b16 %v203
      %v338 = vunpack.c.l.b16 %v204
      %v339 = vunpack.c.h.b16 %v204
      %v340 = vunpack.c.l.b16 %v205
      %v341 = vunpack.c.h.b16 %v205
      %v342 = vunpack.c.l.b16 %v206
      %v343 = vunpack.c.h.b16 %v206
      %v344 = vunpack.c.l.b16 %v207
      %v345 = vunpack.c.h.b16 %v207
      %v346 = vunpack.c.l.b16 %v208
      %v347 = vunpack.c.h.b16 %v208
      %v348 = vunpack.c.l.b16 %v209
      %v349 = vunpack.c.h.b16 %v209
      %v350 = vunpack.c.l.b16 %v210
      %v351 = vunpack.c.h.b16 %v210
      %v352 = vunpack.c.l.b16 %v211
      %v353 = vunpack.c.h.b16 %v211
      %v354 = vunpack.c.l.b16 %v212
      %v355 = vunpack.c.h.b16 %v212
      %v356 = vunpack.c.l.b16 %v213
      %v357 = vunpack.c.h.b16 %v213
      %v358 = vunpack.c.l.b16 %v214
      %v359 = vunpack.c.h.b16 %v214
      %v360 = vunpack.c.l.b16 %v215
      %v361 = vunpack.c.h.b16 %v215
      %v362 = vunpack.c.l.b16 %v216
      %v363 = vunpack.c.h.b16 %v216
      %v364 = vunpack.c.l.b16 %v217
      %v365 = vunpack.c.h.b16 %v217
      %v366 = vunpack.c.l.b16 %v218
      %v367 = vunpack.c.h.b16 %v218
      %v368 = vunpack.c.l.b16 %v219
      %v369 = vunpack.c.h.b16 %v219
      %v370 = vunpack.c.l.b16 %v220
      %v371 = vunpack.c.h.b16 %v220
      %v372 = vunpack.c.l.b16 %v221
      %v373 = vunpack.c.h.b16 %v221
      %v374 = vunpack.c.l.b16 %v222
      %v375 = vunpack.c.h.b16 %v222
      %v376 = vunpack.c.l.b16 %v223
      %v377 = vunpack.c.h.b16 %v223
      %v378 = vunpack.c.l.b16 %v224
      %v379 = vunpack.c.h.b16 %v224
      %v380 = vunpack.c.l.b16 %v225
      %v381 = vunpack.c.h.b16 %v225
      %v382 = vpack.c.b16 %v288, %v286
      %v383 = vpack.c.b16 %v289, %v287
      %v384 = vpack.c.b16 %v292, %v290
      %v385 = vpack.c.b16 %v293, %v291
      %v386 = vpack.c.b16 %v296, %v294
      %v387 = vpack.c.b16 %v297, %v295
      %v388 = vpack.c.b16 %v300, %v298
      %v389 = vpack.c.b16 %v301, %v299
      %v390 = vpack.c.b16 %v304, %v302
      %v391 = vpack.c.b16 %v305, %v303
      %v392 = vpack.c.b16 %v308, %v306
      %v393 = vpack.c.b16 %v309, %v307
      %v394 = vpack.c.b16 %v312, %v310
      %v395 = vpack.c.b16 %v313, %v311
      %v396 = vpack.c.b16 %v316, %v314
      %v397 = vpack.c.b16 %v317, %v315
      %v398 = vpack.c.b16 %v320, %v318
      %v399 = vpack.c.b16 %v321, %v319
      %v400 = vpack.c.b16 %v324, %v322
      %v401 = vpack.c.b16 %v325, %v323
      %v402 = vpack.c.b16 %v328, %v326
      %v403 = vpack.c.b16 %v329, %v327
      %v404 = vpack.c.b16 %v332, %v330
      %v405 = vpack.c.b16 %v333, %v331
      %v406 = vpack.c.b16 %v336, %v334
      %v407 = vpack.c.b16 %v337, %v335
      %v408 = vpack.c.b16 %v340, %v338
      %v409 = vpack.c.b16 %v341, %v339
      %v410 = vpack.c.b16 %v344, %v342
      %v411 = vpack.c.b16 %v345, %v343
      %v412 = vpack.c.b16 %v348, %v346
      %v413 = vpack.c.b16 %v349, %v347
      %v414 = vpack.c.b16 %v352, %v350
      %v415 = vpack.c.b16 %v353, %v351
      %v416 = vpack.c.b16 %v356, %v354
      %v417 = vpack.c.b16 %v357, %v355
      %v418 = vpack.c.b16 %v360, %v358
      %v419 = vpack.c.b16 %v361, %v359
      %v420 = vpack.c.b16 %v364, %v362
      %v421 = vpack.c.b16 %v365, %v363
      %v422 = vpack.c.b16 %v368, %v366
      %v423 = vpack.c.b16 %v369, %v367
      %v424 = vpack.c.b16 %v372, %v370
      %v425 = vpack.c.b16 %v373, %v371
      %v426 = vpack.c.b16 %v376, %v374
      %v427 = vpack.c.b16 %v377, %v375
      %v428 = vpack.c.b16 %v380, %v378
      %v429 = vpack.c.b16 %v381, %v379
      %vm476 = vcmask 1014784
      %v478 = vsel %vm476, %v177, 0
      %vm480 = vcmask 1045504
      %v482 = vsel %vm480, %v428, 0
      %v485 = vsel %vm480, %v429, 0
      %487 = vmatprep.subr.bf16.mxu0 %v383
      %488 = vmatpush1.bf16.msra.mxu0 %v382
      %489 = vmatprep.subr.bf16.mxu0 %v385
      %490 = vmatpush1.bf16.msra.mxu0 %v384
      %491 = vmatprep.subr.bf16.mxu0 %v387
      %492 = vmatpush1.bf16.msra.mxu0 %v386
      %493 = vmatprep.subr.bf16.mxu0 %v389
      %494 = vmatpush1.bf16.msra.mxu0 %v388
      %495 = vmatprep.subr.bf16.mxu0 %v391
      %496 = vmatpush1.bf16.msra.mxu0 %v390
      %497 = vmatprep.subr.bf16.mxu0 %v393
      %498 = vmatpush1.bf16.msra.mxu0 %v392
      %499 = vmatprep.subr.bf16.mxu0 %v395
      %500 = vmatpush1.bf16.msra.mxu0 %v394
      %501 = vmatprep.subr.bf16.mxu0 %v397
      %502 = vmatpush1.bf16.msra.mxu0 %v396
      %503 = vmatprep.subr.bf16.mxu0 %v399
      %504 = vmatpush1.bf16.msra.mxu0 %v398
      %505 = vmatprep.subr.bf16.mxu0 %v401
      %506 = vmatpush1.bf16.msra.mxu0 %v400
      %507 = vmatprep.subr.bf16.mxu0 %v403
      %508 = vmatpush1.bf16.msra.mxu0 %v402
      %509 = vmatprep.subr.bf16.mxu0 %v405
      %510 = vmatpush1.bf16.msra.mxu0 %v404
      %511 = vmatprep.subr.bf16.mxu0 %v407
      %512 = vmatpush1.bf16.msra.mxu0 %v406
      %513 = vmatprep.subr.bf16.mxu0 %v409
      %514 = vmatpush1.bf16.msra.mxu0 %v408
      %515 = vmatprep.subr.bf16.mxu0 %v411
      %516 = vmatpush1.bf16.msra.mxu0 %v410
      %517 = vmatprep.subr.bf16.mxu0 %v413
      %518 = vmatpush1.bf16.msra.mxu0 %v412
      %519 = vmatprep.mubr.bf16.mxu0 %v176
      %520 = vmatmul.mubr.bf16.gmra.mrb[0].mxu0 %v175
      %v521 = vpop.f32.mrb[0].mxu0
      %v522 = vadd.f32 %v231, %v521
      %v523 = vpop.f32.mrb[0].mxu0
      %v524 = vadd.f32 %v235, %v523
      %v525 = vpop.f32.mrb[0].mxu0
      %v526 = vpop.f32.mrb[0].mxu0
      %527 = vdwg.mxu0
      %528 = vmatprep.subr.bf16.mxu0 %v415
      %529 = vmatpush1.bf16.msra.mxu0 %v414
      %530 = vmatprep.subr.bf16.mxu0 %v417
      %531 = vmatpush1.bf16.msra.mxu0 %v416
      %532 = vmatprep.subr.bf16.mxu0 %v419
      %533 = vmatpush1.bf16.msra.mxu0 %v418
      %534 = vmatprep.subr.bf16.mxu0 %v421
      %535 = vmatpush1.bf16.msra.mxu0 %v420
      %536 = vmatprep.subr.bf16.mxu0 %v423
      %537 = vmatpush1.bf16.msra.mxu0 %v422
      %538 = vmatprep.subr.bf16.mxu0 %v425
      %539 = vmatpush1.bf16.msra.mxu0 %v424
      %540 = vmatprep.subr.bf16.mxu0 %v427
      %541 = vmatpush1.bf16.msra.mxu0 %v426
      %542 = vmatprep.subr.bf16.mxu0 %v485
      %543 = vmatpush1.bf16.msra.mxu0 %v482
      %544 = vmatprep.subr.bf16.mxu0 0
      %545 = vmatpush1.bf16.msra.mxu0 0
      %546 = vmatprep.subr.bf16.mxu0 0
      %547 = vmatpush1.bf16.msra.mxu0 0
      %548 = vmatprep.subr.bf16.mxu0 0
      %549 = vmatpush1.bf16.msra.mxu0 0
      %550 = vmatprep.subr.bf16.mxu0 0
      %551 = vmatpush1.bf16.msra.mxu0 0
      %552 = vmatprep.subr.bf16.mxu0 0
      %553 = vmatpush1.bf16.msra.mxu0 0
      %554 = vmatprep.subr.bf16.mxu0 0
      %555 = vmatpush1.bf16.msra.mxu0 0
      %556 = vmatprep.subr.bf16.mxu0 0
      %557 = vmatpush1.bf16.msra.mxu0 0
      %558 = vmatprep.subr.bf16.mxu0 0
      %559 = vmatpush1.bf16.msra.mxu0 0
      %560 = vmatprep.mubr.bf16.mxu0 0
      %561 = vmatmul.mubr.bf16.gmra.mrb[0].mxu0 %v478
      %v562 = vpop.f32.mrb[0].mxu0
      %v563 = vadd.f32 %v522, %v562
      %v564 = vpop.f32.mrb[0].mxu0
      %v565 = vadd.f32 %v524, %v564
      %v566 = vpop.f32.mrb[0].mxu0
      %v567 = vpop.f32.mrb[0].mxu0
      %568 = vdwg.mxu0
      %569 = vst [vmem:[%s170] sm:$0xff] %v563
      %vm570 = vcmask 506880
      %571 = vst.msk [vmem:[%s170 + $0x8] sm:$0xff] %vm570, %v565
      %p572 = scmp.lt.s32.totalorder %s14, 1
      %s573 = scalar_select %p572, %s14, 1
      %s574 = smul.addr %s573, 2
      %s575 = smul.addr %s574, 8
      %s576 = scalar_lea.vmem %s3, %s575
      // Predicated region
      $region33: #{conv1d_sub_forward.1} parent=31 // pred_check
        %p577 = pneg %p100
      $region34: #{conv1d_sub_forward.1} parent=31 // pred_check_branch
        %579 = sbr.rel (%p577) target = $region36
      $region35: #{conv1d_sub_forward.1} parent=31 // pred_region
        _
      $region36: #{conv1d_sub_forward.1} parent=31 // pred_fallthru
        _
    $region32: #{conv1d_sub_forward.1} parent=5 // pred_fallthru
      _
    %p580 = scmp.le.s32.totalorder 2, %s9
    // Predicated region
    $region37: #{conv1d_sub_forward.1} parent=5 // pred_check
      %p581 = pneg %p580
    $region38: #{conv1d_sub_forward.1} parent=5 // pred_check_branch
      %583 = sbr.rel (%p581) target = $region40
    $region39: #{conv1d_sub_forward.1} parent=5 // pred_region
      %s584 = ssub.s32 %s9, 2
      // Predicated region
      $region41: #{conv1d_sub_forward.1} parent=39 // pred_check
        %p585 = pneg %p106
      $region42: #{conv1d_sub_forward.1} parent=39 // pred_check_branch
        %587 = sbr.rel (%p585) target = $region44
      $region43: #{conv1d_sub_forward.1} parent=39 // pred_region
        %p588 = scmp.lt.s32.totalorder %s15, 1
        %s589 = scalar_select %p588, %s15, 1
        %s590 = smul.addr %s589, 2
        %s591 = smul.addr %s590, 8
        %s592 = scalar_lea.vmem %s3, %s591
      $region44: #{conv1d_sub_forward.1} parent=39 // pred_fallthru
        _
    $region40: #{conv1d_sub_forward.1} parent=5 // pred_fallthru
      _
  $region6: #{conv1d_sub_forward.1} parent=0 // loop_footer
    %s13 = sadd.s32 1, %s9
  $region7: #{conv1d_sub_forward.1} parent=0 // loop_footer_branch
    %8 = sbr.rel target = $region3
  $region8: #{conv1d_sub_forward.1} parent=0 // loop_exit
    _

</llo_original>
